<compile_context>
chip_gen: v5e
topology: v5e:2x2
jax: 0.10.0
libtpu: 0.0.40
codegen_flags: <defaults>
</compile_context>

<pallas_src>
import math

import jax
import jax.numpy as jnp
from jax.experimental import pallas as pl
from jax.experimental.pallas import tpu as pltpu


def _stride2_subsample_kernel(x_ref, o_ref):
    """x_ref: (2*R, W) block of the (N*C*H, W) view; o_ref: (R, W_out)."""
    r_out, w_out = o_ref.shape
    w_in = x_ref.shape[1]

    # H subsample (+ plane batching): even block rows are exactly (m, 2*h),
    # since each plane contributes H == 2*H_out consecutive rows.
    v = x_ref[pl.ds(0, r_out, stride=2), :]                    # (R, W)

    # W subsample: compact the even lanes to the front.  out[j] = v[2j], i.e.
    # lane 2j must move left by j; apply that shift bit by bit.  At step k
    # (shift s = 2^k) destination lane d takes the value from lane d+s iff bit
    # (k+1) of (d+s) is set.  Anything landing in lanes >= w_out is a
    # don't-care, so the wrapped tail of the shift is harmless.
    if w_out < w_in:
        lane = jax.lax.broadcasted_iota(jnp.int32, (r_out, w_in), 1)
        shift, k = 1, 0
        while shift < w_out:
            shifted = jnp.concatenate([v[:, shift:], v[:, :shift]], axis=1)
            take = (((lane + shift) >> (k + 1)) & 1) == 1
            v = jnp.where(take, shifted, v)
            shift *= 2
            k += 1

    o_ref[...] = v[:, :w_out]


def last_level_max_pool(x_nchw, *, target_block_bytes=2 << 20):
    """Pallas equivalent of LastLevelMaxPool.forward (NCHW in, [NCHW] out)."""
    N, C, H, W = x_nchw.shape
    # PyTorch max_pool2d output size for k=1, s=2, p=0: floor((dim-1)/2) + 1
    H_out = (H - 1) // 2 + 1
    W_out = (W - 1) // 2 + 1

    # The flattened-row trick needs an even H; the padded (odd-index) row is
    # never selected, so semantics are unchanged.  Even H is the common case
    # for FPN levels, so this pad is normally skipped entirely.
    if H % 2 != 0:
        x_nchw = jnp.pad(x_nchw, ((0, 0), (0, 0), (0, 1), (0, 0)))
    Hp = x_nchw.shape[2]                        # == 2 * H_out

    M = N * C
    x2 = x_nchw.reshape(M * Hp, W)              # free reshape, native layout

    # Choose how many whole (Hp, W) planes each grid step processes.
    itemsize = x_nchw.dtype.itemsize
    bytes_per_plane = Hp * W * itemsize
    bm = max(1, min(target_block_bytes // bytes_per_plane, pl.cdiv(M, 2)))
    # Keep the blocks' sublane counts (bm*H_out and bm*Hp) multiples of 8.
    g = 8 // math.gcd(8, H_out)
    bm = (bm // g) * g
    if bm == 0:
        bm = g if g <= M else M
    bm = min(bm, M)
    grid = (pl.cdiv(M, bm),)

    in_bytes = M * Hp * W * itemsize
    out_bytes = M * H_out * W_out * itemsize

    out2 = pl.pallas_call(
        _stride2_subsample_kernel,
        out_shape=jax.ShapeDtypeStruct((M * H_out, W_out), x_nchw.dtype),
        grid=grid,
        in_specs=[pl.BlockSpec((bm * Hp, W), lambda i: (i, 0))],
        out_specs=pl.BlockSpec((bm * H_out, W_out), lambda i: (i, 0)),
        compiler_params=pltpu.CompilerParams(
            dimension_semantics=("parallel",),
            vmem_limit_bytes=32 * 1024 * 1024,
        ),
        cost_estimate=pl.CostEstimate(
            flops=0, transcendentals=0, bytes_accessed=in_bytes + out_bytes),
    )(x2)

    out_nchw = out2.reshape(N, C, H_out, W_out)
    return [out_nchw]   # forward returns a list with a single (P6) feature map


if __name__ == "__main__":
    key = jax.random.PRNGKey(0)
    # p5-style feature map (NCHW, like PyTorch): batch=2, channels=4, 16x16
    x = jax.random.normal(key, (2, 4, 16, 16), dtype=jnp.float32)

    outs = last_level_max_pool(x)
    out = jax.block_until_ready(outs[0])

    # reference: kernel_size=1 / stride=2 max pool == exact strided subsample
    ref = x[:, :, ::2, ::2]
    assert out.shape == ref.shape, (out.shape, ref.shape)
    assert bool(jnp.array_equal(out, ref)), "Pallas output != strided-subsample reference"
    print("KERNEL_OK")
</pallas_src>

<mosaic_0001>
module attributes {stable_mosaic.version = 11 : i64} {
  func.func @_stride2_subsample_kernel(%arg0: i32, %arg1: memref<64x16xf32, #tpu.memory_space<vmem>>, %arg2: memref<32x8xf32, #tpu.memory_space<vmem>>) attributes {dimension_semantics = [#tpu.dimension_semantics<parallel>], iteration_bounds = array<i64: 2>, scalar_prefetch = 0 : i64, scratch_operands = 0 : i64, tpu.core_type = #tpu.core_type<tc>, window_params = [{transform_indices = @transform_0, window_bounds = array<i64: 64, 16>}, {transform_indices = @transform_1, window_bounds = array<i64: 32, 8>}]} {
    %c0 = arith.constant 0 : index
    %c0_0 = arith.constant 0 : index
    %0 = tpu.strided_load %arg1[%c0, %c0_0] {strides = array<i32: 2, 1>} : memref<64x16xf32, #tpu.memory_space<vmem>>, vector<32x16xf32>
    %1 = tpu.iota {dimensions = array<i32: 1>} : vector<32x16xi32>
    %2 = vector.extract_strided_slice %0 {offsets = [0, 1], sizes = [32, 15], strides = [1, 1]} : vector<32x16xf32> to vector<32x15xf32>
    %3 = vector.extract_strided_slice %0 {offsets = [0, 0], sizes = [32, 1], strides = [1, 1]} : vector<32x16xf32> to vector<32x1xf32>
    %4 = tpu.concatenate %2, %3 in 1 : vector<32x15xf32>, vector<32x1xf32> -> vector<32x16xf32>
    %c1_i32 = arith.constant 1 : i32
    %5 = vector.broadcast %c1_i32 : i32 to vector<32x16xi32>
    %6 = arith.addi %1, %5 : vector<32x16xi32>
    %c1_i32_1 = arith.constant 1 : i32
    %7 = vector.broadcast %c1_i32_1 : i32 to vector<32x16xi32>
    %8 = arith.shrsi %6, %7 : vector<32x16xi32>
    %c1_i32_2 = arith.constant 1 : i32
    %9 = vector.broadcast %c1_i32_2 : i32 to vector<32x16xi32>
    %10 = arith.andi %8, %9 : vector<32x16xi32>
    %c1_i32_3 = arith.constant 1 : i32
    %11 = vector.broadcast %c1_i32_3 : i32 to vector<32x16xi32>
    %12 = arith.cmpi eq, %10, %11 : vector<32x16xi32>
    %13 = arith.select %12, %4, %0 : vector<32x16xi1>, vector<32x16xf32>
    %14 = vector.extract_strided_slice %13 {offsets = [0, 2], sizes = [32, 14], strides = [1, 1]} : vector<32x16xf32> to vector<32x14xf32>
    %15 = vector.extract_strided_slice %13 {offsets = [0, 0], sizes = [32, 2], strides = [1, 1]} : vector<32x16xf32> to vector<32x2xf32>
    %16 = tpu.concatenate %14, %15 in 1 : vector<32x14xf32>, vector<32x2xf32> -> vector<32x16xf32>
    %c2_i32 = arith.constant 2 : i32
    %17 = vector.broadcast %c2_i32 : i32 to vector<32x16xi32>
    %18 = arith.addi %1, %17 : vector<32x16xi32>
    %c2_i32_4 = arith.constant 2 : i32
    %19 = vector.broadcast %c2_i32_4 : i32 to vector<32x16xi32>
    %20 = arith.shrsi %18, %19 : vector<32x16xi32>
    %c1_i32_5 = arith.constant 1 : i32
    %21 = vector.broadcast %c1_i32_5 : i32 to vector<32x16xi32>
    %22 = arith.andi %20, %21 : vector<32x16xi32>
    %c1_i32_6 = arith.constant 1 : i32
    %23 = vector.broadcast %c1_i32_6 : i32 to vector<32x16xi32>
    %24 = arith.cmpi eq, %22, %23 : vector<32x16xi32>
    %25 = arith.select %24, %16, %13 : vector<32x16xi1>, vector<32x16xf32>
    %26 = vector.extract_strided_slice %25 {offsets = [0, 4], sizes = [32, 12], strides = [1, 1]} : vector<32x16xf32> to vector<32x12xf32>
    %27 = vector.extract_strided_slice %25 {offsets = [0, 0], sizes = [32, 4], strides = [1, 1]} : vector<32x16xf32> to vector<32x4xf32>
    %28 = tpu.concatenate %26, %27 in 1 : vector<32x12xf32>, vector<32x4xf32> -> vector<32x16xf32>
    %c4_i32 = arith.constant 4 : i32
    %29 = vector.broadcast %c4_i32 : i32 to vector<32x16xi32>
    %30 = arith.addi %1, %29 : vector<32x16xi32>
    %c3_i32 = arith.constant 3 : i32
    %31 = vector.broadcast %c3_i32 : i32 to vector<32x16xi32>
    %32 = arith.shrsi %30, %31 : vector<32x16xi32>
    %c1_i32_7 = arith.constant 1 : i32
    %33 = vector.broadcast %c1_i32_7 : i32 to vector<32x16xi32>
    %34 = arith.andi %32, %33 : vector<32x16xi32>
    %c1_i32_8 = arith.constant 1 : i32
    %35 = vector.broadcast %c1_i32_8 : i32 to vector<32x16xi32>
    %36 = arith.cmpi eq, %34, %35 : vector<32x16xi32>
    %37 = arith.select %36, %28, %25 : vector<32x16xi1>, vector<32x16xf32>
    %38 = vector.extract_strided_slice %37 {offsets = [0, 0], sizes = [32, 8], strides = [1, 1]} : vector<32x16xf32> to vector<32x8xf32>
    %c0_9 = arith.constant 0 : index
    %c0_10 = arith.constant 0 : index
    %39 = vector.load %arg2[%c0_9, %c0_10] : memref<32x8xf32, #tpu.memory_space<vmem>>, vector<32x8xf32>
    tpu.vector_store %arg2[%c0_9, %c0_10], %38 {strides = array<i32>} : memref<32x8xf32, #tpu.memory_space<vmem>>, vector<32x8xf32>,
    return
  }
  func.func @transform_0(%arg0: i32) -> (i32, i32) {
    %c0_i32 = arith.constant 0 : i32
    %c0_i32_0 = arith.constant 0 : i32
    return %arg0, %c0_i32 : i32, i32
  }
  func.func @transform_1(%arg0: i32) -> (i32, i32) {
    %c0_i32 = arith.constant 0 : i32
    %c0_i32_0 = arith.constant 0 : i32
    return %arg0, %c0_i32 : i32, i32
  }
}

</mosaic_0001>

<llo_original>
// kernel: tpu_custom_call.1
$region0: #{tpu_custom_call.1}
  #allocation0 [shape = 'u32[]', space=smem, size = 0x4, offset = 0x4, fixed_abs, tag = 'smem constant byte address 0x4 - core index']
  #allocation1 [shape = 'u32[72,128]{1,0:T(1,128)}', space=vmem, size = 0x9000, scoped, tag = 'internal scratch']
  %s0 = inlined_call_operand.vmem [shape: f32[128,16], index: 0, kind: input, shape index: {}]
  %s1 = inlined_call_operand.vmem [shape: f32[64,8], index: 1, kind: output, shape index: {}]
  %s2 = sld [smem:[#allocation0]]
  $region37: #{tpu_custom_call.1} parent=0
    _
  %s4 = ssub.s32 1, %s2
  %s5 = scalar_select 0, %s4, %s2
  loop: start=0, step=1, limit=4
  $region2: #{tpu_custom_call.1} parent=0 // loop_pre_header
    _
  $region3: #{tpu_custom_call.1} parent=0 // loop_header
    %s7 = sphi 0, %s11
    %p8 = scmp.ge.s32.totalorder %s7, 4
    %s17 = sphi 0, %s19
    %s20 = sphi 0, %s17
    %s21 = sphi 0, %s20
    %s37 = sphi 0, %s21
    %s43 = sphi 0, %s45
    %s46 = sphi 0, %s43
    %s47 = sphi 0, %s46
    %s63 = sphi 0, %s47
  $region4: #{tpu_custom_call.1} parent=0 // loop_header_branch
    %10 = sbr.rel (%p8) target = $region8
  $region5: #{tpu_custom_call.1} parent=0 // loop_body
    %s12 = ssub.s32 %s7, 1
    %s13 = ssub.s32 %s7, 2
    %s14 = sadd.s32 %s7, 1
    %s15 = ssub.s32 %s7, %s14
    %p16 = scmp.eq.s32.totalorder %s15, 0
    %s18 = sadd.s32 %s17, 1
    %s19 = scalar_select %p16, %s17, %s18
    %p22 = pneg %p16
    %p23 = scmp.eq.s32.totalorder %s7, 1
    %p24 = por %p22, %p23
    %p25 = scmp.ne.s32.totalorder %s17, %s20
    %p26 = scmp.eq.s32.totalorder %s7, 0
    %p27 = por %p25, %p26
    %p28 = scmp.ne.s32.totalorder %s17, %s20
    %p29 = scmp.eq.s32.totalorder %s12, 1
    %p30 = por %p28, %p29
    %p31 = scmp.ne.s32.totalorder %s20, %s21
    %p32 = scmp.eq.s32.totalorder %s12, 0
    %p33 = por %p31, %p32
    %p34 = scmp.ne.s32.totalorder %s20, %s21
    %p35 = scmp.eq.s32.totalorder %s13, 1
    %p36 = por %p34, %p35
    %p38 = scmp.ne.s32.totalorder %s21, %s37
    %p39 = scmp.eq.s32.totalorder %s13, 0
    %p40 = por %p38, %p39
    %s41 = ssub.s32 %s7, %s14
    %p42 = scmp.eq.s32.totalorder %s41, 0
    %s44 = sadd.s32 %s43, 1
    %s45 = scalar_select %p42, %s43, %s44
    %p48 = pneg %p42
    %p49 = scmp.eq.s32.totalorder %s7, 1
    %p50 = por %p48, %p49
    %p51 = scmp.ne.s32.totalorder %s43, %s46
    %p52 = scmp.eq.s32.totalorder %s7, 0
    %p53 = por %p51, %p52
    %p54 = scmp.ne.s32.totalorder %s43, %s46
    %p55 = scmp.eq.s32.totalorder %s12, 1
    %p56 = por %p54, %p55
    %p57 = scmp.ne.s32.totalorder %s46, %s47
    %p58 = scmp.eq.s32.totalorder %s12, 0
    %p59 = por %p57, %p58
    %p60 = scmp.ne.s32.totalorder %s46, %s47
    %p61 = scmp.eq.s32.totalorder %s13, 1
    %p62 = por %p60, %p61
    %p64 = scmp.ne.s32.totalorder %s47, %s63
    %p65 = scmp.eq.s32.totalorder %s13, 0
    %p66 = por %p64, %p65
    %p67 = scmp.le.s32.totalorder 1, %s7
    %p68 = scmp.lt.s32.totalorder %s7, 3
    %p69 = pnand %p67, %p68
    %p70 = pneg %p69
    // Predicated region
    $region9: #{tpu_custom_call.1} parent=5 // pred_check
      _
    $region10: #{tpu_custom_call.1} parent=5 // pred_check_branch
      %72 = sbr.rel (%p69) target = $region12
    $region11: #{tpu_custom_call.1} parent=5 // pred_region
      %s73 = ssub.s32 %s7, 1
    $region12: #{tpu_custom_call.1} parent=5 // pred_fallthru
      _
    %p74 = scmp.lt.s32.totalorder %s7, 2
    // Predicated region
    $region13: #{tpu_custom_call.1} parent=5 // pred_check
      %p75 = pneg %p74
    $region14: #{tpu_custom_call.1} parent=5 // pred_check_branch
      %77 = sbr.rel (%p75) target = $region16
    $region15: #{tpu_custom_call.1} parent=5 // pred_region
      // Predicated region
      $region17: #{tpu_custom_call.1} parent=15 // pred_check
        %p78 = pneg %p27
      $region18: #{tpu_custom_call.1} parent=15 // pred_check_branch
        %80 = sbr.rel (%p78) target = $region20
      $region19: #{tpu_custom_call.1} parent=15 // pred_region
        %s81 = smul.u32 8, %s7
        %p82 = scmp.lt.s32.totalorder %s81, 15
        %s83 = scalar_select %p82, %s81, 15
        %s84 = smul.addr %s83, 8
        %s85 = scalar_lea.vmem %s0, %s84
        %s86 = smul.u32 8, %s7
      $region20: #{tpu_custom_call.1} parent=15 // pred_fallthru
        _
    $region16: #{tpu_custom_call.1} parent=5 // pred_fallthru
      _
    %p87 = scmp.le.s32.totalorder 1, %s7
    %p88 = scmp.lt.s32.totalorder %s7, 3
    %p89 = pnand %p87, %p88
    %p90 = pneg %p89
    // Predicated region
    $region21: #{tpu_custom_call.1} parent=5 // pred_check
      _
    $region22: #{tpu_custom_call.1} parent=5 // pred_check_branch
      %92 = sbr.rel (%p89) target = $region24
    $region23: #{tpu_custom_call.1} parent=5 // pred_region
      %s93 = ssub.s32 %s7, 1
      %s94 = smul.u32 8, %s12
      %p95 = scmp.lt.s32.totalorder %s94, 15
      %s96 = scalar_select %p95, %s94, 15
      %s97 = smul.addr %s96, 8
      %s98 = scalar_lea.vmem %s0, %s97
      %p99 = pneg %p33
      %p100 = pneg %p30
      %p101 = pneg %p59
      %p102 = pneg %p56
      %s103 = smul.u32 4, %s12
      %p104 = scmp.lt.s32.totalorder %s103, 7
      %s105 = scalar_select %p104, %s103, 7
      %s106 = smul.addr %s105, 8
      %s107 = scalar_lea.vmem %s1, %s106
      %s108 = smul.u32 8, %s12
      %p109 = scmp.lt.s32.totalorder %s108, 15
      %s110 = scalar_select %p109, %s108, 15
      %s111 = smul.addr %s110, 8
      %s112 = scalar_lea.vmem %s0, %s111
      %s113 = smul.u32 8, %s12
      %s114 = smul.u32 4, %s12
      %p115 = scmp.lt.s32.totalorder %s114, 7
      %s116 = scalar_select %p115, %s114, 7
      %s117 = smul.addr %s116, 8
      %s118 = scalar_lea.vmem %s1, %s117
      %s119 = smul.u32 4, %s12
      %v120 = vld [vmem:[%s112] ss:$2 sm:$0xff]
      %s121 = scalar_lea.vmem %s112, 16
      %v122 = vld [vmem:[%s121] ss:$2 sm:$0xff]
      %s123 = scalar_lea.vmem %s112, 32
      %v124 = vld [vmem:[%s123] ss:$2 sm:$0xff]
      %s125 = scalar_lea.vmem %s112, 48
      %v126 = vld [vmem:[%s125] ss:$2 sm:$0xff]
      %v127 = vlaneseq
      %v128 = vand.u32 %v127, 127
      %133 = vrot.lane.b32.xlu0 %v120, 127
      %v134 = vpop.permute.xlu0 %133
      %135 = vrot.lane.b32.xlu0 %v122, 127
      %v136 = vpop.permute.xlu0 %135
      %137 = vrot.lane.b32.xlu0 %v124, 127
      %v138 = vpop.permute.xlu0 %137
      %139 = vrot.lane.b32.xlu0 %v126, 127
      %v140 = vpop.permute.xlu0 %139
      %145 = vrot.lane.b32.xlu0 %v120, 15
      %v146 = vpop.permute.xlu0 %145
      %147 = vrot.lane.b32.xlu0 %v122, 15
      %v148 = vpop.permute.xlu0 %147
      %149 = vrot.lane.b32.xlu0 %v124, 15
      %v150 = vpop.permute.xlu0 %149
      %151 = vrot.lane.b32.xlu0 %v126, 15
      %v152 = vpop.permute.xlu0 %151
      %vm157 = vcmask 121856
      %v158 = vsel %vm157, %v134, %v146
      %v159 = vsel %vm157, %v136, %v148
      %v160 = vsel %vm157, %v138, %v150
      %v161 = vsel %vm157, %v140, %v152
      %v162 = vadd.s32 %v128, 1
      %v163 = vshra.s32 %v162, 1
      %v164 = vand.u32 %v163, 1
      %vm165 = vcmp.eq.s32.totalorder %v164, 1
      %v166 = vsel %vm165, %v158, %v120
      %v167 = vsel %vm165, %v159, %v122
      %v168 = vsel %vm165, %v160, %v124
      %v169 = vsel %vm165, %v161, %v126
      %174 = vrot.lane.b32.xlu0 %v166, 126
      %v175 = vpop.permute.xlu0 %174
      %176 = vrot.lane.b32.xlu0 %v167, 126
      %v177 = vpop.permute.xlu0 %176
      %178 = vrot.lane.b32.xlu0 %v168, 126
      %v179 = vpop.permute.xlu0 %178
      %180 = vrot.lane.b32.xlu0 %v169, 126
      %v181 = vpop.permute.xlu0 %180
      %186 = vrot.lane.b32.xlu0 %v166, 14
      %v187 = vpop.permute.xlu0 %186
      %188 = vrot.lane.b32.xlu0 %v167, 14
      %v189 = vpop.permute.xlu0 %188
      %190 = vrot.lane.b32.xlu0 %v168, 14
      %v191 = vpop.permute.xlu0 %190
      %192 = vrot.lane.b32.xlu0 %v169, 14
      %v193 = vpop.permute.xlu0 %192
      %vm198 = vcmask 113664
      %v199 = vsel %vm198, %v175, %v187
      %v200 = vsel %vm198, %v177, %v189
      %v201 = vsel %vm198, %v179, %v191
      %v202 = vsel %vm198, %v181, %v193
      %v203 = vadd.s32 %v128, 2
      %v204 = vshra.s32 %v203, 2
      %v205 = vand.u32 %v204, 1
      %vm206 = vcmp.eq.s32.totalorder %v205, 1
      %v207 = vsel %vm206, %v199, %v166
      %v208 = vsel %vm206, %v200, %v167
      %v209 = vsel %vm206, %v201, %v168
      %v210 = vsel %vm206, %v202, %v169
      %215 = vrot.lane.b32.xlu0 %v207, 124
      %v216 = vpop.permute.xlu0 %215
      %217 = vrot.lane.b32.xlu0 %v208, 124
      %v218 = vpop.permute.xlu0 %217
      %219 = vrot.lane.b32.xlu0 %v209, 124
      %v220 = vpop.permute.xlu0 %219
      %221 = vrot.lane.b32.xlu0 %v210, 124
      %v222 = vpop.permute.xlu0 %221
      %227 = vrot.lane.b32.xlu0 %v207, 12
      %v228 = vpop.permute.xlu0 %227
      %229 = vrot.lane.b32.xlu0 %v208, 12
      %v230 = vpop.permute.xlu0 %229
      %231 = vrot.lane.b32.xlu0 %v209, 12
      %v232 = vpop.permute.xlu0 %231
      %233 = vrot.lane.b32.xlu0 %v210, 12
      %v234 = vpop.permute.xlu0 %233
      %vm239 = vcmask 97280
      %v240 = vsel %vm239, %v216, %v228
      %v241 = vsel %vm239, %v218, %v230
      %v242 = vsel %vm239, %v220, %v232
      %v243 = vsel %vm239, %v222, %v234
      %v244 = vadd.s32 %v128, 4
      %v245 = vshra.s32 %v244, 3
      %v246 = vand.u32 %v245, 1
      %vm247 = vcmp.eq.s32.totalorder %v246, 1
      %v248 = vsel %vm247, %v240, %v207
      %v249 = vsel %vm247, %v241, %v208
      %v250 = vsel %vm247, %v242, %v209
      %v251 = vsel %vm247, %v243, %v210
      %vm252 = vcmask 64512
      %253 = vst.msk [vmem:[%s118] sm:$0xff] %vm252, %v248
      %254 = vst.msk [vmem:[%s118 + $0x8] sm:$0xff] %vm252, %v249
      %255 = vst.msk [vmem:[%s118 + $0x10] sm:$0xff] %vm252, %v250
      %256 = vst.msk [vmem:[%s118 + $0x18] sm:$0xff] %vm252, %v251
      %s257 = smul.u32 4, %s12
      %p258 = scmp.lt.s32.totalorder %s257, 7
      %s259 = scalar_select %p258, %s257, 7
      %s260 = smul.addr %s259, 8
      %s261 = scalar_lea.vmem %s1, %s260
      // Predicated region
      $region25: #{tpu_custom_call.1} parent=23 // pred_check
        %p262 = pneg %p56
      $region26: #{tpu_custom_call.1} parent=23 // pred_check_branch
        %264 = sbr.rel (%p262) target = $region28
      $region27: #{tpu_custom_call.1} parent=23 // pred_region
        %s265 = smul.u32 4, %s12
      $region28: #{tpu_custom_call.1} parent=23 // pred_fallthru
        _
    $region24: #{tpu_custom_call.1} parent=5 // pred_fallthru
      _
    %p266 = scmp.le.s32.totalorder 2, %s7
    // Predicated region
    $region29: #{tpu_custom_call.1} parent=5 // pred_check
      %p267 = pneg %p266
    $region30: #{tpu_custom_call.1} parent=5 // pred_check_branch
      %269 = sbr.rel (%p267) target = $region32
    $region31: #{tpu_custom_call.1} parent=5 // pred_region
      %s270 = ssub.s32 %s7, 2
      // Predicated region
      $region33: #{tpu_custom_call.1} parent=31 // pred_check
        %p271 = pneg %p62
      $region34: #{tpu_custom_call.1} parent=31 // pred_check_branch
        %273 = sbr.rel (%p271) target = $region36
      $region35: #{tpu_custom_call.1} parent=31 // pred_region
        %s274 = smul.u32 4, %s13
        %p275 = scmp.lt.s32.totalorder %s274, 7
        %s276 = scalar_select %p275, %s274, 7
        %s277 = smul.addr %s276, 8
        %s278 = scalar_lea.vmem %s1, %s277
      $region36: #{tpu_custom_call.1} parent=31 // pred_fallthru
        _
    $region32: #{tpu_custom_call.1} parent=5 // pred_fallthru
      _
  $region6: #{tpu_custom_call.1} parent=0 // loop_footer
    %s11 = sadd.s32 1, %s7
  $region7: #{tpu_custom_call.1} parent=0 // loop_footer_branch
    %6 = sbr.rel target = $region3
  $region8: #{tpu_custom_call.1} parent=0 // loop_exit
    _

</llo_original>
